<compile_context>
chip_gen: v6e
topology: v6e:2x2x1
jax: 0.10.0
libtpu: 0.0.40
codegen_flags: <defaults>
</compile_context>

<pallas_src>
import functools
import math

import jax
import jax.numpy as jnp
from jax.experimental import pallas as pl
from jax.experimental.pallas import tpu as pltpu

EPS = 1e-5  # nn.LayerNorm default eps


def _vmem_specs(n):
    return [pl.BlockSpec(memory_space=pltpu.MemorySpace.VMEM) for _ in range(n)]


def _ln(h, g, b):
    """LayerNorm over the last (lane) axis, then affine: (h - mu)/sigma * g + b."""
    mu = jnp.mean(h, axis=-1, keepdims=True)
    var = jnp.mean((h - mu) ** 2, axis=-1, keepdims=True)
    return (h - mu) * jax.lax.rsqrt(var + EPS) * g + b


# ------------------------- Pallas kernels -------------------------

def _embed_kernel(st_ref, at_ref, rw_ref, sw_ref, aw_ref, rww_ref, prm_ref,
                  pe_s_ref, pe_a_ref, st_o_ref, at_o_ref, rt_o_ref):
    """All three token embeddings fused: LN(x @ W + b) * g + beta + pe.

    prm_ref rows: [s_b, s_g, s_beta, a_b, a_g, a_beta, r_b, r_g, r_beta].
    Rows are batch-major: row = b * T(+1) + t, so pe_*_ref already carries pe[t].
    """
    prm = prm_ref[...]

    # state tokens: (B*(T+1), state_dim) @ (state_dim, D)
    hs = jnp.dot(st_ref[...], sw_ref[...], preferred_element_type=jnp.float32)
    hs = hs + prm[0:1, :]
    st_o_ref[...] = _ln(hs, prm[1:2, :], prm[2:3, :]) + pe_s_ref[...]

    # action tokens: (B*T, action_dim) @ (action_dim, D)
    ha = jnp.dot(at_ref[...], aw_ref[...], preferred_element_type=jnp.float32)
    ha = ha + prm[3:4, :]
    at_o_ref[...] = _ln(ha, prm[4:5, :], prm[5:6, :]) + pe_a_ref[...]

    # reward tokens: K == 1 projection is an outer product -> VPU broadcast-mul
    hr = rw_ref[...] * rww_ref[...] + prm[6:7, :]
    rt_o_ref[...] = _ln(hr, prm[7:8, :], prm[8:9, :]) + pe_a_ref[...]


def _layer_kernel(x_ref, in_w_ref, in_b_ref, out_w_ref, ff1_w_ref, ff1_b_ref,
                  ff2_w_ref, vec_ref, o_ref, *, B, S, H, hd, scale):
    """One fused post-norm transformer encoder layer on batch-major rows.

    x_ref: (B*S, D) with rows ordered (batch, token).
    vec_ref rows: [out_b, ln1_g, ln1_b, ff2_b, ln2_g, ln2_b].
    """
    D = H * hd
    x = x_ref[...]                                        # (B*S, D)
    vec = vec_ref[...]

    # ---- self attention ----
    qkv = jnp.dot(x, in_w_ref[...], preferred_element_type=jnp.float32)
    qkv = qkv + in_b_ref[...]
    q = qkv[:, :D] * scale          # hoist 1/sqrt(hd) into q once
    k = qkv[:, D:2 * D]
    v = qkv[:, 2 * D:]

    ctx_rows = []
    for b in range(B):              # static Python loops, unrolled at trace time
        r0 = b * S
        qb, kb, vb = q[r0:r0 + S, :], k[r0:r0 + S, :], v[r0:r0 + S, :]
        head_ctx = []
        for h in range(H):
            c0 = h * hd
            qh = qb[:, c0:c0 + hd]
            kh = kb[:, c0:c0 + hd]
            vh = vb[:, c0:c0 + hd]
            # scores = qh @ kh^T without materializing a transpose (NT matmul)
            s = jax.lax.dot_general(qh, kh, (((1,), (1,)), ((), ())),
                                    preferred_element_type=jnp.float32)  # (S, S)
            m = jnp.max(s, axis=-1, keepdims=True)
            p = jnp.exp(s - m)
            l = jnp.sum(p, axis=-1, keepdims=True)
            p = p * pl.reciprocal(l, approx=True)         # EUP slot, off VPU path
            head_ctx.append(jnp.dot(p, vh, preferred_element_type=jnp.float32))
        ctx_rows.append(jnp.concatenate(head_ctx, axis=-1))      # (S, D)
    ctx = jnp.concatenate(ctx_rows, axis=0)                      # (B*S, D)

    attn = jnp.dot(ctx, out_w_ref[...], preferred_element_type=jnp.float32)
    attn = attn + vec[0:1, :]
    x1 = _ln(x + attn, vec[1:2, :], vec[2:3, :])

    # ---- feed forward ----
    hf = jnp.dot(x1, ff1_w_ref[...], preferred_element_type=jnp.float32)
    hf = jnp.maximum(hf + ff1_b_ref[...], 0.0)
    ff = jnp.dot(hf, ff2_w_ref[...], preferred_element_type=jnp.float32)
    ff = ff + vec[3:4, :]
    o_ref[...] = _ln(x1 + ff, vec[4:5, :], vec[5:6, :])


# ------------------------- Pallas wrappers -------------------------

def embed_all(params, states, actions, rewards, cfg):
    """One pallas_call computing state/action/reward token embeddings (+LN, +PE)."""
    D = cfg["d_model"]
    B, T = actions.shape[0], actions.shape[1]
    Ts = T + 1
    st2 = states.reshape(B * Ts, states.shape[-1])
    at2 = actions.reshape(B * T, actions.shape[-1])
    rw2 = rewards.reshape(B * T, 1)

    # positional encodings per batch-major row (row = b*T(+1) + t -> pe[t])
    pe_s = jnp.tile(params["pe"][:Ts], (B, 1))
    pe_a = jnp.tile(params["pe"][:T], (B, 1))

    prm = jnp.stack([params["state_b"], params["state_g"], params["state_beta"],
                     params["action_b"], params["action_g"], params["action_beta"],
                     params["reward_b"], params["reward_g"], params["reward_beta"]],
                    axis=0)                                     # (9, D)

    return pl.pallas_call(
        _embed_kernel,
        out_shape=(jax.ShapeDtypeStruct((B * Ts, D), jnp.float32),
                   jax.ShapeDtypeStruct((B * T, D), jnp.float32),
                   jax.ShapeDtypeStruct((B * T, D), jnp.float32)),
        in_specs=_vmem_specs(9),
        out_specs=tuple(_vmem_specs(3)),
    )(st2, at2, rw2, params["state_w"], params["action_w"],
      params["reward_w"], prm, pe_s, pe_a)


def encoder_layer(x, lp, B, S, H):
    """One pallas_call = one fully fused transformer encoder layer."""
    D = x.shape[-1]
    hd = D // H
    scale = 1.0 / math.sqrt(hd)
    vecs = jnp.stack([lp["out_b"], lp["ln1_g"], lp["ln1_b"],
                      lp["ff2_b"], lp["ln2_g"], lp["ln2_b"]], axis=0)   # (6, D)
    return pl.pallas_call(
        functools.partial(_layer_kernel, B=B, S=S, H=H, hd=hd, scale=scale),
        out_shape=jax.ShapeDtypeStruct((B * S, D), jnp.float32),
        in_specs=_vmem_specs(8),
        out_specs=pl.BlockSpec(memory_space=pltpu.MemorySpace.VMEM),
    )(x, lp["in_w"], lp["in_b"][None, :], lp["out_w"], lp["ff1_w"],
      lp["ff1_b"][None, :], lp["ff2_w"], vecs)


# ------------------------- model glue -------------------------

def encoder_forward(params, states, actions, rewards, cfg):
    D, H = cfg["d_model"], cfg["nhead"]
    B, T = actions.shape[0], actions.shape[1]
    # TODO(synk): seq_len == 0 branch (state_0 + special only) not implemented.
    assert T > 0
    S = 3 * T + 2

    st2, at2, rt2 = embed_all(params, states, actions, rewards, cfg)
    st3 = st2.reshape(B, T + 1, D)
    at3 = at2.reshape(B, T, D)
    rt3 = rt2.reshape(B, T, D)

    # batch-major token stream: per batch [s_0, (a_0, r_0, s_1), ..., special]
    inter = jnp.stack([at3, rt3, st3[:, 1:]], axis=2).reshape(B, 3 * T, D)
    special = jnp.broadcast_to(params["special"], (B, 1, D))
    x = jnp.concatenate([st3[:, :1], inter, special], axis=1).reshape(B * S, D)

    for lp in params["layers"]:
        x = encoder_layer(x, lp, B, S, H)

    # present seq-major (S, B, D) like nn.TransformerEncoder (batch_first=False)
    return x.reshape(B, S, D).transpose(1, 0, 2)


# ------------------------- parameters -------------------------

def init_params(key, cfg):
    D, dff = cfg["d_model"], cfg["dff"]
    nlayers, max_len = cfg["nlayers"], cfg["max_len"]
    state_dim, action_dim = cfg["state_dim"], cfg["action_dim"]

    def lin(k, fan_in, fan_out):
        kw, kb = jax.random.split(k)
        bound = 1.0 / math.sqrt(fan_in)
        w = jax.random.uniform(kw, (fan_in, fan_out), jnp.float32, -bound, bound)
        b = jax.random.uniform(kb, (fan_out,), jnp.float32, -bound, bound)
        return w, b

    keys = jax.random.split(key, 4 + nlayers)
    p = {}
    p["state_w"], p["state_b"] = lin(keys[0], state_dim, D)
    p["action_w"], p["action_b"] = lin(keys[1], action_dim, D)
    p["reward_w"], p["reward_b"] = lin(keys[2], 1, D)
    for name in ("state", "action", "reward"):
        p[name + "_g"] = jnp.ones((D,), jnp.float32)
        p[name + "_beta"] = jnp.zeros((D,), jnp.float32)
    # torch init is zeros; small random values used here to make the test nontrivial
    p["pe"] = 0.02 * jax.random.normal(keys[3], (max_len, D), jnp.float32)
    p["special"] = jnp.full((1, 1, D), -2.0, jnp.float32)

    layers = []
    for l in range(nlayers):
        ks = jax.random.split(keys[4 + l], 4)
        lp = {}
        lp["in_w"], lp["in_b"] = lin(ks[0], D, 3 * D)
        lp["out_w"], lp["out_b"] = lin(ks[1], D, D)
        lp["ff1_w"], lp["ff1_b"] = lin(ks[2], D, dff)
        lp["ff2_w"], lp["ff2_b"] = lin(ks[3], dff, D)
        lp["ln1_g"] = jnp.ones((D,), jnp.float32)
        lp["ln1_b"] = jnp.zeros((D,), jnp.float32)
        lp["ln2_g"] = jnp.ones((D,), jnp.float32)
        lp["ln2_b"] = jnp.zeros((D,), jnp.float32)
        layers.append(lp)
    p["layers"] = layers
    return p


# ------------------------- pure-JAX reference -------------------------

def reference_forward(params, states, actions, rewards, cfg):
    D, H = cfg["d_model"], cfg["nhead"]
    hd = D // H
    B, T = actions.shape[0], actions.shape[1]

    def ln(x, g, b):
        mu = x.mean(-1, keepdims=True)
        var = ((x - mu) ** 2).mean(-1, keepdims=True)
        return (x - mu) / jnp.sqrt(var + EPS) * g + b

    def embed(x, w, b, g, bb):
        return ln(x @ w + b, g, bb)

    st = embed(states, params["state_w"], params["state_b"],
               params["state_g"], params["state_beta"])
    at = embed(actions, params["action_w"], params["action_b"],
               params["action_g"], params["action_beta"])
    rt = embed(rewards, params["reward_w"], params["reward_b"],
               params["reward_g"], params["reward_beta"])

    st_sm = jnp.transpose(st, (1, 0, 2)) + params["pe"][:T + 1][:, None, :]
    at_sm = jnp.transpose(at, (1, 0, 2)) + params["pe"][:T][:, None, :]
    rt_sm = jnp.transpose(rt, (1, 0, 2)) + params["pe"][:T][:, None, :]
    special = jnp.broadcast_to(params["special"], (1, B, D))
    inter = jnp.stack([at_sm, rt_sm, st_sm[1:]], axis=1).reshape(3 * T, B, D)
    src = jnp.concatenate([st_sm[0:1], inter, special], axis=0)
    S = src.shape[0]
    x = src
    scale = 1.0 / math.sqrt(hd)
    for lp in params["layers"]:
        qkv = x @ lp["in_w"] + lp["in_b"]
        q, k, v = jnp.split(qkv, 3, axis=-1)

        def heads(t):
            return t.reshape(S, B, H, hd).transpose(1, 2, 0, 3)

        qh, kh, vh = heads(q), heads(k), heads(v)
        sc = jnp.einsum("bhsd,bhtd->bhst", qh, kh) * scale
        p = jax.nn.softmax(sc, axis=-1)
        ctx = jnp.einsum("bhst,bhtd->bhsd", p, vh)
        ctx = ctx.transpose(2, 0, 1, 3).reshape(S, B, D)
        attn_out = ctx @ lp["out_w"] + lp["out_b"]
        x = ln(x + attn_out, lp["ln1_g"], lp["ln1_b"])
        h = jax.nn.relu(x @ lp["ff1_w"] + lp["ff1_b"])
        ff = h @ lp["ff2_w"] + lp["ff2_b"]
        x = ln(x + ff, lp["ln2_g"], lp["ln2_b"])
    return x


# ------------------------- main -------------------------

if __name__ == "__main__":
    cfg = dict(state_dim=12, action_dim=6, d_model=32, nhead=4, dff=64,
               nlayers=2, max_len=10)
    B, T = 2, 4   # states carry T+1 steps (the forward uses state_token[0] and [1:])

    key = jax.random.PRNGKey(0)
    kp, ks, ka, kr = jax.random.split(key, 4)
    params = init_params(kp, cfg)
    states = jax.random.normal(ks, (B, T + 1, cfg["state_dim"]), jnp.float32)
    actions = jax.random.normal(ka, (B, T, cfg["action_dim"]), jnp.float32)
    rewards = jax.random.normal(kr, (B, T, 1), jnp.float32)

    out = encoder_forward(params, states, actions, rewards, cfg)
    out = jax.block_until_ready(out)

    assert out.shape == (3 * T + 2, B, cfg["d_model"]), out.shape
    ref = reference_forward(params, states, actions, rewards, cfg)
    max_err = float(jnp.max(jnp.abs(out - ref)))
    assert jnp.allclose(out, ref, atol=1e-2, rtol=1e-2), f"max abs err {max_err}"
    print("KERNEL_OK")
</pallas_src>

<mosaic_0001>
module attributes {stable_mosaic.version = 11 : i64} {
  func.func @_embed_kernel(%arg0: memref<10x12xf32, #tpu.memory_space<vmem>>, %arg1: memref<8x6xf32, #tpu.memory_space<vmem>>, %arg2: memref<8x1xf32, #tpu.memory_space<vmem>>, %arg3: memref<12x32xf32, #tpu.memory_space<vmem>>, %arg4: memref<6x32xf32, #tpu.memory_space<vmem>>, %arg5: memref<1x32xf32, #tpu.memory_space<vmem>>, %arg6: memref<9x32xf32, #tpu.memory_space<vmem>>, %arg7: memref<10x32xf32, #tpu.memory_space<vmem>>, %arg8: memref<8x32xf32, #tpu.memory_space<vmem>>, %arg9: memref<10x32xf32, #tpu.memory_space<vmem>>, %arg10: memref<8x32xf32, #tpu.memory_space<vmem>>, %arg11: memref<8x32xf32, #tpu.memory_space<vmem>>) attributes {dimension_semantics = [], scalar_prefetch = 0 : i64, scratch_operands = 0 : i64, tpu.core_type = #tpu.core_type<tc>} {
    %c0 = arith.constant 0 : index
    %c0_0 = arith.constant 0 : index
    %0 = vector.load %arg6[%c0, %c0_0] : memref<9x32xf32, #tpu.memory_space<vmem>>, vector<9x32xf32>
    %c0_1 = arith.constant 0 : index
    %c0_2 = arith.constant 0 : index
    %1 = vector.load %arg0[%c0_1, %c0_2] : memref<10x12xf32, #tpu.memory_space<vmem>>, vector<10x12xf32>
    %c0_3 = arith.constant 0 : index
    %c0_4 = arith.constant 0 : index
    %2 = vector.load %arg3[%c0_3, %c0_4] : memref<12x32xf32, #tpu.memory_space<vmem>>, vector<12x32xf32>
    %cst = arith.constant dense<0.000000e+00> : vector<10x32xf32>
    %3 = tpu.matmul %1, %2, %cst {dimension_numbers = #tpu.dot_dimension_numbers<[1], [0], [0], [1], [0, 0, 1, 1], [], []>} : vector<10x12xf32>, vector<12x32xf32>, vector<10x32xf32> -> vector<10x32xf32>
    %4 = vector.extract_strided_slice %0 {offsets = [0, 0], sizes = [1, 32], strides = [1, 1]} : vector<9x32xf32> to vector<1x32xf32>
    %5 = vector.broadcast %4 : vector<1x32xf32> to vector<10x32xf32>
    %6 = arith.addf %3, %5 : vector<10x32xf32>
    %7 = vector.extract_strided_slice %0 {offsets = [1, 0], sizes = [1, 32], strides = [1, 1]} : vector<9x32xf32> to vector<1x32xf32>
    %8 = vector.extract_strided_slice %0 {offsets = [2, 0], sizes = [1, 32], strides = [1, 1]} : vector<9x32xf32> to vector<1x32xf32>
    %cst_5 = arith.constant dense<0.000000e+00> : vector<10xf32>
    %9 = vector.multi_reduction <add>, %6, %cst_5 [1] : vector<10x32xf32> to vector<10xf32>
    %10 = vector.shape_cast %9 : vector<10xf32> to vector<10x1xf32>
    %cst_6 = arith.constant 3.200000e+01 : f32
    %11 = vector.broadcast %cst_6 : f32 to vector<10x1xf32>
    %12 = arith.divf %10, %11 : vector<10x1xf32>
    %13 = vector.broadcast %12 : vector<10x1xf32> to vector<10x32xf32>
    %14 = arith.subf %6, %13 : vector<10x32xf32>
    %15 = arith.mulf %14, %14 : vector<10x32xf32>
    %cst_7 = arith.constant dense<0.000000e+00> : vector<10xf32>
    %16 = vector.multi_reduction <add>, %15, %cst_7 [1] : vector<10x32xf32> to vector<10xf32>
    %17 = vector.shape_cast %16 : vector<10xf32> to vector<10x1xf32>
    %cst_8 = arith.constant 3.200000e+01 : f32
    %18 = vector.broadcast %cst_8 : f32 to vector<10x1xf32>
    %19 = arith.divf %17, %18 : vector<10x1xf32>
    %20 = vector.broadcast %12 : vector<10x1xf32> to vector<10x32xf32>
    %21 = arith.subf %6, %20 : vector<10x32xf32>
    %cst_9 = arith.constant 9.99999974E-6 : f32
    %22 = vector.broadcast %cst_9 : f32 to vector<10x1xf32>
    %23 = arith.addf %19, %22 : vector<10x1xf32>
    %24 = math.rsqrt %23 : vector<10x1xf32>
    %25 = vector.broadcast %24 : vector<10x1xf32> to vector<10x32xf32>
    %26 = arith.mulf %21, %25 : vector<10x32xf32>
    %27 = vector.broadcast %7 : vector<1x32xf32> to vector<10x32xf32>
    %28 = arith.mulf %26, %27 : vector<10x32xf32>
    %29 = vector.broadcast %8 : vector<1x32xf32> to vector<10x32xf32>
    %30 = arith.addf %28, %29 : vector<10x32xf32>
    %c0_10 = arith.constant 0 : index
    %c0_11 = arith.constant 0 : index
    %31 = vector.load %arg7[%c0_10, %c0_11] : memref<10x32xf32, #tpu.memory_space<vmem>>, vector<10x32xf32>
    %32 = arith.addf %30, %31 : vector<10x32xf32>
    %c0_12 = arith.constant 0 : index
    %c0_13 = arith.constant 0 : index
    %33 = vector.load %arg9[%c0_12, %c0_13] : memref<10x32xf32, #tpu.memory_space<vmem>>, vector<10x32xf32>
    tpu.vector_store %arg9[%c0_12, %c0_13], %32 {strides = array<i32>} : memref<10x32xf32, #tpu.memory_space<vmem>>, vector<10x32xf32>,
    %c0_14 = arith.constant 0 : index
    %c0_15 = arith.constant 0 : index
    %34 = vector.load %arg1[%c0_14, %c0_15] : memref<8x6xf32, #tpu.memory_space<vmem>>, vector<8x6xf32>
    %c0_16 = arith.constant 0 : index
    %c0_17 = arith.constant 0 : index
    %35 = vector.load %arg4[%c0_16, %c0_17] : memref<6x32xf32, #tpu.memory_space<vmem>>, vector<6x32xf32>
    %cst_18 = arith.constant dense<0.000000e+00> : vector<8x32xf32>
    %36 = tpu.matmul %34, %35, %cst_18 {dimension_numbers = #tpu.dot_dimension_numbers<[1], [0], [0], [1], [0, 0, 1, 1], [], []>} : vector<8x6xf32>, vector<6x32xf32>, vector<8x32xf32> -> vector<8x32xf32>
    %37 = vector.extract_strided_slice %0 {offsets = [3, 0], sizes = [1, 32], strides = [1, 1]} : vector<9x32xf32> to vector<1x32xf32>
    %38 = vector.broadcast %37 : vector<1x32xf32> to vector<8x32xf32>
    %39 = arith.addf %36, %38 : vector<8x32xf32>
    %40 = vector.extract_strided_slice %0 {offsets = [4, 0], sizes = [1, 32], strides = [1, 1]} : vector<9x32xf32> to vector<1x32xf32>
    %41 = vector.extract_strided_slice %0 {offsets = [5, 0], sizes = [1, 32], strides = [1, 1]} : vector<9x32xf32> to vector<1x32xf32>
    %cst_19 = arith.constant dense<0.000000e+00> : vector<8xf32>
    %42 = vector.multi_reduction <add>, %39, %cst_19 [1] : vector<8x32xf32> to vector<8xf32>
    %43 = vector.shape_cast %42 : vector<8xf32> to vector<8x1xf32>
    %cst_20 = arith.constant 3.200000e+01 : f32
    %44 = vector.broadcast %cst_20 : f32 to vector<8x1xf32>
    %45 = arith.divf %43, %44 : vector<8x1xf32>
    %46 = vector.broadcast %45 : vector<8x1xf32> to vector<8x32xf32>
    %47 = arith.subf %39, %46 : vector<8x32xf32>
    %48 = arith.mulf %47, %47 : vector<8x32xf32>
    %cst_21 = arith.constant dense<0.000000e+00> : vector<8xf32>
    %49 = vector.multi_reduction <add>, %48, %cst_21 [1] : vector<8x32xf32> to vector<8xf32>
    %50 = vector.shape_cast %49 : vector<8xf32> to vector<8x1xf32>
    %cst_22 = arith.constant 3.200000e+01 : f32
    %51 = vector.broadcast %cst_22 : f32 to vector<8x1xf32>
    %52 = arith.divf %50, %51 : vector<8x1xf32>
    %53 = vector.broadcast %45 : vector<8x1xf32> to vector<8x32xf32>
    %54 = arith.subf %39, %53 : vector<8x32xf32>
    %cst_23 = arith.constant 9.99999974E-6 : f32
    %55 = vector.broadcast %cst_23 : f32 to vector<8x1xf32>
    %56 = arith.addf %52, %55 : vector<8x1xf32>
    %57 = math.rsqrt %56 : vector<8x1xf32>
    %58 = vector.broadcast %57 : vector<8x1xf32> to vector<8x32xf32>
    %59 = arith.mulf %54, %58 : vector<8x32xf32>
    %60 = vector.broadcast %40 : vector<1x32xf32> to vector<8x32xf32>
    %61 = arith.mulf %59, %60 : vector<8x32xf32>
    %62 = vector.broadcast %41 : vector<1x32xf32> to vector<8x32xf32>
    %63 = arith.addf %61, %62 : vector<8x32xf32>
    %c0_24 = arith.constant 0 : index
    %c0_25 = arith.constant 0 : index
    %64 = vector.load %arg8[%c0_24, %c0_25] : memref<8x32xf32, #tpu.memory_space<vmem>>, vector<8x32xf32>
    %65 = arith.addf %63, %64 : vector<8x32xf32>
    %c0_26 = arith.constant 0 : index
    %c0_27 = arith.constant 0 : index
    %66 = vector.load %arg10[%c0_26, %c0_27] : memref<8x32xf32, #tpu.memory_space<vmem>>, vector<8x32xf32>
    tpu.vector_store %arg10[%c0_26, %c0_27], %65 {strides = array<i32>} : memref<8x32xf32, #tpu.memory_space<vmem>>, vector<8x32xf32>,
    %c0_28 = arith.constant 0 : index
    %c0_29 = arith.constant 0 : index
    %67 = vector.load %arg2[%c0_28, %c0_29] : memref<8x1xf32, #tpu.memory_space<vmem>>, vector<8x1xf32>
    %c0_30 = arith.constant 0 : index
    %c0_31 = arith.constant 0 : index
    %68 = vector.load %arg5[%c0_30, %c0_31] : memref<1x32xf32, #tpu.memory_space<vmem>>, vector<1x32xf32>
    %69 = vector.broadcast %67 : vector<8x1xf32> to vector<8x32xf32>
    %70 = vector.broadcast %68 : vector<1x32xf32> to vector<8x32xf32>
    %71 = arith.mulf %69, %70 : vector<8x32xf32>
    %72 = vector.extract_strided_slice %0 {offsets = [6, 0], sizes = [1, 32], strides = [1, 1]} : vector<9x32xf32> to vector<1x32xf32>
    %73 = vector.broadcast %72 : vector<1x32xf32> to vector<8x32xf32>
    %74 = arith.addf %71, %73 : vector<8x32xf32>
    %75 = vector.extract_strided_slice %0 {offsets = [7, 0], sizes = [1, 32], strides = [1, 1]} : vector<9x32xf32> to vector<1x32xf32>
    %76 = vector.extract_strided_slice %0 {offsets = [8, 0], sizes = [1, 32], strides = [1, 1]} : vector<9x32xf32> to vector<1x32xf32>
    %cst_32 = arith.constant dense<0.000000e+00> : vector<8xf32>
    %77 = vector.multi_reduction <add>, %74, %cst_32 [1] : vector<8x32xf32> to vector<8xf32>
    %78 = vector.shape_cast %77 : vector<8xf32> to vector<8x1xf32>
    %cst_33 = arith.constant 3.200000e+01 : f32
    %79 = vector.broadcast %cst_33 : f32 to vector<8x1xf32>
    %80 = arith.divf %78, %79 : vector<8x1xf32>
    %81 = vector.broadcast %80 : vector<8x1xf32> to vector<8x32xf32>
    %82 = arith.subf %74, %81 : vector<8x32xf32>
    %83 = arith.mulf %82, %82 : vector<8x32xf32>
    %cst_34 = arith.constant dense<0.000000e+00> : vector<8xf32>
    %84 = vector.multi_reduction <add>, %83, %cst_34 [1] : vector<8x32xf32> to vector<8xf32>
    %85 = vector.shape_cast %84 : vector<8xf32> to vector<8x1xf32>
    %cst_35 = arith.constant 3.200000e+01 : f32
    %86 = vector.broadcast %cst_35 : f32 to vector<8x1xf32>
    %87 = arith.divf %85, %86 : vector<8x1xf32>
    %88 = vector.broadcast %80 : vector<8x1xf32> to vector<8x32xf32>
    %89 = arith.subf %74, %88 : vector<8x32xf32>
    %cst_36 = arith.constant 9.99999974E-6 : f32
    %90 = vector.broadcast %cst_36 : f32 to vector<8x1xf32>
    %91 = arith.addf %87, %90 : vector<8x1xf32>
    %92 = math.rsqrt %91 : vector<8x1xf32>
    %93 = vector.broadcast %92 : vector<8x1xf32> to vector<8x32xf32>
    %94 = arith.mulf %89, %93 : vector<8x32xf32>
    %95 = vector.broadcast %75 : vector<1x32xf32> to vector<8x32xf32>
    %96 = arith.mulf %94, %95 : vector<8x32xf32>
    %97 = vector.broadcast %76 : vector<1x32xf32> to vector<8x32xf32>
    %98 = arith.addf %96, %97 : vector<8x32xf32>
    %c0_37 = arith.constant 0 : index
    %c0_38 = arith.constant 0 : index
    %99 = vector.load %arg8[%c0_37, %c0_38] : memref<8x32xf32, #tpu.memory_space<vmem>>, vector<8x32xf32>
    %100 = arith.addf %98, %99 : vector<8x32xf32>
    %c0_39 = arith.constant 0 : index
    %c0_40 = arith.constant 0 : index
    %101 = vector.load %arg11[%c0_39, %c0_40] : memref<8x32xf32, #tpu.memory_space<vmem>>, vector<8x32xf32>
    tpu.vector_store %arg11[%c0_39, %c0_40], %100 {strides = array<i32>} : memref<8x32xf32, #tpu.memory_space<vmem>>, vector<8x32xf32>,
    return
  }
}

</mosaic_0001>

<llo_original>
// kernel: tpu_custom_call.1
$region0: #{tpu_custom_call.1}
  #allocation0 [shape = 'u32[]', space=smem, size = 0x4, offset = 0x4, fixed_abs, tag = 'smem constant byte address 0x4 - core index']
  #allocation1 [shape = 'u32[144,128]{1,0:T(1,128)}', space=vmem, size = 0x12000, scoped, tag = 'internal scratch']
  %s0 = inlined_call_operand.hbm [shape: f32[10,12], index: 0, kind: input, shape index: {}]
  %s1 = inlined_call_operand.hbm [shape: f32[8,6], index: 1, kind: input, shape index: {}]
  %s2 = inlined_call_operand.vmem [shape: f32[8,1], index: 2, kind: input, shape index: {}]
  %s3 = inlined_call_operand.hbm [shape: f32[12,32], index: 3, kind: input, shape index: {}]
  %s4 = inlined_call_operand.hbm [shape: f32[6,32], index: 4, kind: input, shape index: {}]
  %s5 = inlined_call_operand.vmem [shape: f32[1,32], index: 5, kind: input, shape index: {}]
  %s6 = inlined_call_operand.vmem [shape: f32[9,32], index: 6, kind: input, shape index: {}]
  %s7 = inlined_call_operand.hbm [shape: f32[10,32], index: 7, kind: input, shape index: {}]
  %s8 = inlined_call_operand.hbm [shape: f32[8,32], index: 8, kind: input, shape index: {}]
  %s9 = inlined_call_operand.hbm [shape: f32[10,32], index: 9, kind: output, shape index: {0}]
  %s10 = inlined_call_operand.hbm [shape: f32[8,32], index: 10, kind: output, shape index: {1}]
  %s11 = inlined_call_operand.hbm [shape: f32[8,32], index: 11, kind: output, shape index: {2}]
  %12 = xla_tuple %s9, %s10, %s11
  %s13 = sld [smem:[#allocation0]]
  $region86: #{tpu_custom_call.1} parent=0
    _
  %s15 = ssub.s32 1, %s13
  %s16 = scalar_select 0, %s15, %s13
  $region1: #{tpu_custom_call.1} parent=0
    #allocation2 [shape = 'u8[8192]{0}', space=vmem, size = 0x2000, scoped, tag = 'input window, operand 0, single buffered']
    #allocation3 [shape = 's32[1]{0}', space=sflag, size = 0x4, scoped, tag = 'scoped memory for tpu_custom_call.1']
    #allocation4 [shape = 's32[1]{0}', space=sflag, size = 0x4, scoped, tag = 'scoped memory for tpu_custom_call.1']
    #allocation5 [shape = 'u8[4096]{0}', space=vmem, size = 0x1000, scoped, tag = 'input window, operand 1, single buffered']
    #allocation6 [shape = 's32[1]{0}', space=sflag, size = 0x4, scoped, tag = 'scoped memory for tpu_custom_call.1']
    #allocation7 [shape = 'u8[8192]{0}', space=vmem, size = 0x2000, scoped, tag = 'input window, operand 3, single buffered']
    #allocation8 [shape = 'u8[4096]{0}', space=vmem, size = 0x1000, scoped, tag = 'input window, operand 4, single buffered']
    #allocation9 [shape = 's32[1]{0}', space=sflag, size = 0x4, scoped, tag = 'scoped memory for tpu_custom_call.1']
    #allocation10 [shape = 'u8[8192]{0}', space=vmem, size = 0x2000, scoped, tag = 'input window, operand 7, single buffered']
    #allocation11 [shape = 'u8[4096]{0}', space=vmem, size = 0x1000, scoped, tag = 'input window, operand 8, single buffered']
    #allocation12 [shape = 's32[1]{0}', space=sflag, size = 0x4, scoped, tag = 'scoped memory for tpu_custom_call.1']
    #allocation13 [shape = 'u8[8192]{0}', space=vmem, size = 0x2000, scoped, tag = 'output window, operand 0, single buffered']
    #allocation14 [shape = 'u8[4096]{0}', space=vmem, size = 0x1000, scoped, tag = 'output window, operand 1, single buffered']
    #allocation15 [shape = 's32[1]{0}', space=sflag, size = 0x4, scoped, tag = 'scoped memory for tpu_custom_call.1']
    #allocation16 [shape = 'u8[4096]{0}', space=vmem, size = 0x1000, scoped, tag = 'output window, operand 2, single buffered']
    %17 = vsyncpa [#allocation3], 0
    %18 = vsyncpa [#allocation6], 0
    %19 = vsyncpa [#allocation9], 0
    %20 = vsyncpa [#allocation12], 0
    %21 = vsyncpa [#allocation4], 0
    %22 = vsyncpa [#allocation15], 0
    // Predicated region
    $region2: #{tpu_custom_call.1} parent=1 // pred_check
      _
    $region3: #{tpu_custom_call.1} parent=1 // pred_check_branch
      %24 = sbr.rel (0) target = $region5
    $region4: #{tpu_custom_call.1} parent=1 // pred_region
      %s26 = ssub.s32 256, 256
      %27 = vsyncadd [#allocation3], %s26
      %s28 = sshll.u32 [#allocation2], 4
      %s29 = int_to_ptr.vmem [resolvable:$true] %s28
      %34 = dma.hbm_to_vmem [thread:$0]  %s0, 256, %s29, [#allocation3], 128, 128, 8
    $region5: #{tpu_custom_call.1} parent=1 // pred_fallthru
      _
    // Predicated region
    $region6: #{tpu_custom_call.1} parent=1 // pred_check
      _
    $region7: #{tpu_custom_call.1} parent=1 // pred_check_branch
      %36 = sbr.rel (0) target = $region9
    $region8: #{tpu_custom_call.1} parent=1 // pred_region
      %s38 = ssub.s32 128, 128
      %39 = vsyncadd [#allocation6], %s38
      %s41 = sshll.u32 [#allocation5], 4
      %s42 = int_to_ptr.vmem [resolvable:$true] %s41
      %44 = dma.hbm_to_vmem [thread:$0]  %s1, 128, %s42, [#allocation6]
    $region9: #{tpu_custom_call.1} parent=1 // pred_fallthru
      _
    // Predicated region
    $region10: #{tpu_custom_call.1} parent=1 // pred_check
      _
    $region11: #{tpu_custom_call.1} parent=1 // pred_check_branch
      %46 = sbr.rel (0) target = $region13
    $region12: #{tpu_custom_call.1} parent=1 // pred_region
      _
    $region13: #{tpu_custom_call.1} parent=1 // pred_fallthru
      _
    // Predicated region
    $region14: #{tpu_custom_call.1} parent=1 // pred_check
      _
    $region15: #{tpu_custom_call.1} parent=1 // pred_check_branch
      %48 = sbr.rel (0) target = $region17
    $region16: #{tpu_custom_call.1} parent=1 // pred_region
      %s50 = ssub.s32 256, 256
      %51 = vsyncadd [#allocation6], %s50
      %s52 = sshll.u32 [#allocation7], 4
      %s53 = int_to_ptr.vmem [resolvable:$true] %s52
      %58 = dma.hbm_to_vmem [thread:$0]  %s3, 256, %s53, [#allocation6], 128, 128, 8
    $region17: #{tpu_custom_call.1} parent=1 // pred_fallthru
      _
    // Predicated region
    $region18: #{tpu_custom_call.1} parent=1 // pred_check
      _
    $region19: #{tpu_custom_call.1} parent=1 // pred_check_branch
      %60 = sbr.rel (0) target = $region21
    $region20: #{tpu_custom_call.1} parent=1 // pred_region
      %s62 = ssub.s32 128, 128
      %63 = vsyncadd [#allocation9], %s62
      %s65 = sshll.u32 [#allocation8], 4
      %s66 = int_to_ptr.vmem [resolvable:$true] %s65
      %68 = dma.hbm_to_vmem [thread:$0]  %s4, 128, %s66, [#allocation9]
    $region21: #{tpu_custom_call.1} parent=1 // pred_fallthru
      _
    // Predicated region
    $region22: #{tpu_custom_call.1} parent=1 // pred_check
      _
    $region23: #{tpu_custom_call.1} parent=1 // pred_check_branch
      %70 = sbr.rel (0) target = $region25
    $region24: #{tpu_custom_call.1} parent=1 // pred_region
      _
    $region25: #{tpu_custom_call.1} parent=1 // pred_fallthru
      _
    // Predicated region
    $region26: #{tpu_custom_call.1} parent=1 // pred_check
      _
    $region27: #{tpu_custom_call.1} parent=1 // pred_check_branch
      %72 = sbr.rel (0) target = $region29
    $region28: #{tpu_custom_call.1} parent=1 // pred_region
      _
    $region29: #{tpu_custom_call.1} parent=1 // pred_fallthru
      _
    // Predicated region
    $region30: #{tpu_custom_call.1} parent=1 // pred_check
      _
    $region31: #{tpu_custom_call.1} parent=1 // pred_check_branch
      %74 = sbr.rel (0) target = $region33
    $region32: #{tpu_custom_call.1} parent=1 // pred_region
      %s76 = ssub.s32 256, 256
      %77 = vsyncadd [#allocation9], %s76
      %s78 = sshll.u32 [#allocation10], 4
      %s79 = int_to_ptr.vmem [resolvable:$true] %s78
      %84 = dma.hbm_to_vmem [thread:$0]  %s7, 256, %s79, [#allocation9], 128, 128, 8
    $region33: #{tpu_custom_call.1} parent=1 // pred_fallthru
      _
    // Predicated region
    $region34: #{tpu_custom_call.1} parent=1 // pred_check
      _
    $region35: #{tpu_custom_call.1} parent=1 // pred_check_branch
      %86 = sbr.rel (0) target = $region37
    $region36: #{tpu_custom_call.1} parent=1 // pred_region
      %s88 = ssub.s32 128, 128
      %89 = vsyncadd [#allocation12], %s88
      %s91 = sshll.u32 [#allocation11], 4
      %s92 = int_to_ptr.vmem [resolvable:$true] %s91
      %94 = dma.hbm_to_vmem [thread:$0]  %s8, 128, %s92, [#allocation12]
    $region37: #{tpu_custom_call.1} parent=1 // pred_fallthru
      _
    // Predicated region
    $region38: #{tpu_custom_call.1} parent=1 // pred_check
      _
    $region39: #{tpu_custom_call.1} parent=1 // pred_check_branch
      %96 = sbr.rel (0) target = $region41
    $region40: #{tpu_custom_call.1} parent=1 // pred_region
      %97 = dma.done [#allocation3], 256
    $region41: #{tpu_custom_call.1} parent=1 // pred_fallthru
      _
    // Predicated region
    $region42: #{tpu_custom_call.1} parent=1 // pred_check
      _
    $region43: #{tpu_custom_call.1} parent=1 // pred_check_branch
      %99 = sbr.rel (0) target = $region45
    $region44: #{tpu_custom_call.1} parent=1 // pred_region
      %100 = dma.done [#allocation6], 128
    $region45: #{tpu_custom_call.1} parent=1 // pred_fallthru
      _
    // Predicated region
    $region46: #{tpu_custom_call.1} parent=1 // pred_check
      _
    $region47: #{tpu_custom_call.1} parent=1 // pred_check_branch
      %102 = sbr.rel (0) target = $region49
    $region48: #{tpu_custom_call.1} parent=1 // pred_region
      %103 = dma.done [#allocation6], 256
    $region49: #{tpu_custom_call.1} parent=1 // pred_fallthru
      _
    // Predicated region
    $region50: #{tpu_custom_call.1} parent=1 // pred_check
      _
    $region51: #{tpu_custom_call.1} parent=1 // pred_check_branch
      %105 = sbr.rel (0) target = $region53
    $region52: #{tpu_custom_call.1} parent=1 // pred_region
      %106 = dma.done [#allocation9], 128
    $region53: #{tpu_custom_call.1} parent=1 // pred_fallthru
      _
    // Predicated region
    $region54: #{tpu_custom_call.1} parent=1 // pred_check
      _
    $region55: #{tpu_custom_call.1} parent=1 // pred_check_branch
      %108 = sbr.rel (0) target = $region57
    $region56: #{tpu_custom_call.1} parent=1 // pred_region
      %109 = dma.done [#allocation9], 256
    $region57: #{tpu_custom_call.1} parent=1 // pred_fallthru
      _
    // Predicated region
    $region58: #{tpu_custom_call.1} parent=1 // pred_check
      _
    $region59: #{tpu_custom_call.1} parent=1 // pred_check_branch
      %111 = sbr.rel (0) target = $region61
    $region60: #{tpu_custom_call.1} parent=1 // pred_region
      %112 = dma.done [#allocation12], 128
    $region61: #{tpu_custom_call.1} parent=1 // pred_fallthru
      _
    %v113 = vld [vmem:[%s6] sm:$0xff]
    %v114 = vld [vmem:[%s6 + $0x8] sm:$0x1]
    %v115 = vld [vmem:[#allocation2] sm:$0xff]
    %v116 = vld [vmem:[#allocation2 + $0x8] sm:$0x3]
    %v117 = vld [vmem:[#allocation7] sm:$0xff]
    %v118 = vld [vmem:[#allocation7 + $0x8] sm:$0xf]
    %v119 = vlaneseq
    %v120 = vshrl.u32 %v119, 7
    %v121 = vsub.s32 0, %v120
    %v122 = vrot.slane %v113, %v121
    %vm123 = vcmask 97280
    %v125 = vsel %vm123, %v115, 0
    %v128 = vsel %vm123, %v116, 0
    %vm130 = vcmask 1043456
    %v132 = vsel %vm130, %v118, 0
    %134 = vmatprep.subr.mxu0 0.0
    %135 = vmatpush1.msra.mxu0 0.0
    %136 = vmatprep.subr.mxu0 0.0
    %137 = vmatpush1.msra.mxu0 0.0
    %138 = vmatprep.subr.mxu0 0.0
    %139 = vmatpush1.msra.mxu0 0.0
    %140 = vmatprep.subr.mxu0 0.0
    %141 = vmatpush1.msra.mxu0 0.0
    %142 = vmatprep.subr.mxu0 0.0
    %143 = vmatpush1.msra.mxu0 0.0
    %144 = vmatprep.subr.mxu0 0.0
    %145 = vmatpush1.msra.mxu0 0.0
    %146 = vmatprep.subr.mxu0 0.0
    %147 = vmatpush1.msra.mxu0 0.0
    %148 = vmatprep.subr.mxu0 0.0
    %149 = vmatpush1.msra.mxu0 0.0
    %150 = vmatprep.subr.mxu0 0.0
    %151 = vmatpush1.msra.mxu0 0.0
    %152 = vmatprep.subr.mxu0 0.0
    %153 = vmatpush1.msra.mxu0 0.0
    %154 = vmatprep.subr.mxu0 0.0
    %155 = vmatpush1.msra.mxu0 0.0
    %156 = vmatprep.subr.mxu0 0.0
    %157 = vmatpush1.msra.mxu0 0.0
    %158 = vmatprep.subr.mxu0 0.0
    %159 = vmatpush1.msra.mxu0 0.0
    %160 = vmatprep.subr.mxu0 0.0
    %161 = vmatpush1.msra.mxu0 0.0
    %162 = vmatprep.subr.mxu0 0.0
    %163 = vmatpush1.msra.mxu0 %v132
    %164 = vmatprep.subr.mxu0 0.0
    %165 = vmatpush1.msra.mxu0 %v117
    %166 = vmatprep.subr.mxu0 0.0
    %167 = vmatpush2.msra.mxu0 0.0
    %168 = vmatprep.subr.mxu0 0.0
    %169 = vmatpush2.msra.mxu0 0.0
    %170 = vmatprep.subr.mxu0 0.0
    %171 = vmatpush2.msra.mxu0 0.0
    %172 = vmatprep.subr.mxu0 0.0
    %173 = vmatpush2.msra.mxu0 0.0
    %174 = vmatprep.subr.mxu0 0.0
    %175 = vmatpush2.msra.mxu0 0.0
    %176 = vmatprep.subr.mxu0 0.0
    %177 = vmatpush2.msra.mxu0 0.0
    %178 = vmatprep.subr.mxu0 0.0
    %179 = vmatpush2.msra.mxu0 0.0
    %180 = vmatprep.subr.mxu0 0.0
    %181 = vmatpush2.msra.mxu0 0.0
    %182 = vmatprep.subr.mxu0 0.0
    %183 = vmatpush2.msra.mxu0 0.0
    %184 = vmatprep.subr.mxu0 0.0
    %185 = vmatpush2.msra.mxu0 0.0
    %186 = vmatprep.subr.mxu0 0.0
    %187 = vmatpush2.msra.mxu0 0.0
    %188 = vmatprep.subr.mxu0 0.0
    %189 = vmatpush2.msra.mxu0 0.0
    %190 = vmatprep.subr.mxu0 0.0
    %191 = vmatpush2.msra.mxu0 0.0
    %192 = vmatprep.subr.mxu0 0.0
    %193 = vmatpush2.msra.mxu0 0.0
    %194 = vmatprep.subr.mxu0 0.0
    %195 = vmatpush2.msra.mxu0 0.0
    %196 = vmatprep.subr.mxu0 0.0
    %197 = vmatpush2.msra.mxu0 0.0
    %198 = vmatprep.mubr.f32.mxu0 0.0
    %199 = vmatmul.mubr.f32.gmra.mxu0 %v125
    %v200 = vpop.f32.mrf.mxu0
    %v201 = vadd.f32 %v122, %v200
    %v202 = vpop.f32.mrf.mxu0
    %203 = vmatprep.mubr.f32.mxu0 0.0
    %204 = vmatmul.mubr.f32.gmra.mxu0 %v128
    %v205 = vpop.f32.mrf.mxu0
    %v206 = vadd.f32 %v122, %v205
    %v207 = vpop.f32.mrf.mxu0
    %208 = vdwg.mxu0
    %vm209 = vcmask 261120
    %v210 = vsel %vm209, %v201, 0.0
    %211 = vadd.xlane.f32.xlu0 %v210
    %v212 = vpop.xlane.xlu0 %211
    %vm213 = vcmask 254976
    %v214 = vsel %vm213, %v206, 0.0
    %215 = vadd.xlane.f32.xlu0 %v214
    %v216 = vpop.xlane.xlu0 %215
    %v217 = vrcp.pop 32.0
    %v218 = vmul.f32 %v212, %v217
    %v219 = vmul.f32 %v216, %v217
    %v220 = vsub.f32 %v201, %v218
    %v221 = vsub.f32 %v206, %v219
    %v222 = vmul.f32 %v220, %v220
    %v223 = vmul.f32 %v221, %v221
    %v224 = vsel %vm209, %v222, 0.0
    %225 = vadd.xlane.f32.xlu0 %v224
    %v226 = vpop.xlane.xlu0 %225
    %v227 = vsel %vm213, %v223, 0.0
    %228 = vadd.xlane.f32.xlu0 %v227
    %v229 = vpop.xlane.xlu0 %228
    %v230 = vmul.f32 %v226, %v217
    %v231 = vmul.f32 %v229, %v217
    %v232 = vadd.f32 %v230, 1e-05
    %v233 = vadd.f32 %v231, 1e-05
    %v234 = vrsqrt.pop %v232
    %v235 = vrsqrt.pop %v233
    %v236 = vmul.f32 %v220, %v234
    %v237 = vmul.f32 %v221, %v235
    %v238 = vlaneseq
    %v239 = vshrl.u32 %v238, 7
    %v240 = vsub.s32 1, %v239
    %v241 = vrot.slane %v113, %v240
    %v242 = vmul.f32 %v236, %v241
    %v243 = vmul.f32 %v237, %v241
    %v244 = vlaneseq
    %v245 = vshrl.u32 %v244, 7
    %v246 = vsub.s32 2, %v245
    %v247 = vrot.slane %v113, %v246
    %v248 = vadd.f32 %v242, %v247
    %v249 = vadd.f32 %v243, %v247
    %v250 = vld [vmem:[#allocation10] sm:$0xff]
    %v251 = vld [vmem:[#allocation10 + $0x8] sm:$0x3]
    %v252 = vadd.f32 %v248, %v250
    %v253 = vadd.f32 %v249, %v251
    %254 = vst.msk [vmem:[#allocation13] sm:$0xff] %vm209, %v252
    %255 = vst.msk [vmem:[#allocation13 + $0x8] sm:$0x3] %vm213, %v253
    %v256 = vld [vmem:[#allocation5] sm:$0xff]
    %v257 = vld [vmem:[#allocation8] sm:$0x3f]
    %v258 = vlaneseq
    %v259 = vshrl.u32 %v258, 7
    %v260 = vsub.s32 3, %v259
    %v261 = vrot.slane %v113, %v260
    %vm262 = vcmask 48128
    %v264 = vsel %vm262, %v256, 0
    %vm266 = vcmask 1045504
    %v268 = vsel %vm266, %v257, 0
    %270 = vmatprep.subr.mxu0 0.0
    %271 = vmatpush1.msra.mxu0 0.0
    %272 = vmatprep.subr.mxu0 0.0
    %273 = vmatpush1.msra.mxu0 0.0
    %274 = vmatprep.subr.mxu0 0.0
    %275 = vmatpush1.msra.mxu0 0.0
    %276 = vmatprep.subr.mxu0 0.0
    %277 = vmatpush1.msra.mxu0 0.0
    %278 = vmatprep.subr.mxu0 0.0
    %279 = vmatpush1.msra.mxu0 0.0
    %280 = vmatprep.subr.mxu0 0.0
    %281 = vmatpush1.msra.mxu0 0.0
    %282 = vmatprep.subr.mxu0 0.0
    %283 = vmatpush1.msra.mxu0 0.0
    %284 = vmatprep.subr.mxu0 0.0
    %285 = vmatpush1.msra.mxu0 0.0
    %286 = vmatprep.subr.mxu0 0.0
    %287 = vmatpush1.msra.mxu0 0.0
    %288 = vmatprep.subr.mxu0 0.0
    %289 = vmatpush1.msra.mxu0 0.0
    %290 = vmatprep.subr.mxu0 0.0
    %291 = vmatpush1.msra.mxu0 0.0
    %292 = vmatprep.subr.mxu0 0.0
    %293 = vmatpush1.msra.mxu0 0.0
    %294 = vmatprep.subr.mxu0 0.0
    %295 = vmatpush1.msra.mxu0 0.0
    %296 = vmatprep.subr.mxu0 0.0
    %297 = vmatpush1.msra.mxu0 0.0
    %298 = vmatprep.subr.mxu0 0.0
    %299 = vmatpush1.msra.mxu0 0.0
    %300 = vmatprep.subr.mxu0 0.0
    %301 = vmatpush1.msra.mxu0 %v268
    %302 = vmatprep.subr.mxu0 0.0
    %303 = vmatpush2.msra.mxu0 0.0
    %304 = vmatprep.subr.mxu0 0.0
    %305 = vmatpush2.msra.mxu0 0.0
    %306 = vmatprep.subr.mxu0 0.0
    %307 = vmatpush2.msra.mxu0 0.0
    %308 = vmatprep.subr.mxu0 0.0
    %309 = vmatpush2.msra.mxu0 0.0
    %310 = vmatprep.subr.mxu0 0.0
    %311 = vmatpush2.msra.mxu0 0.0
    %312 = vmatprep.subr.mxu0 0.0
    %313 = vmatpush2.msra.mxu0 0.0
    %314 = vmatprep.subr.mxu0 0.0
    %315 = vmatpush2.msra.mxu0 0.0
    %316 = vmatprep.subr.mxu0 0.0
    %317 = vmatpush2.msra.mxu0 0.0
    %318 = vmatprep.subr.mxu0 0.0
    %319 = vmatpush2.msra.mxu0 0.0
    %320 = vmatprep.subr.mxu0 0.0
    %321 = vmatpush2.msra.mxu0 0.0
    %322 = vmatprep.subr.mxu0 0.0
    %323 = vmatpush2.msra.mxu0 0.0
    %324 = vmatprep.subr.mxu0 0.0
    %325 = vmatpush2.msra.mxu0 0.0
    %326 = vmatprep.subr.mxu0 0.0
    %327 = vmatpush2.msra.mxu0 0.0
    %328 = vmatprep.subr.mxu0 0.0
    %329 = vmatpush2.msra.mxu0 0.0
    %330 = vmatprep.subr.mxu0 0.0
    %331 = vmatpush2.msra.mxu0 0.0
    %332 = vmatprep.subr.mxu0 0.0
    %333 = vmatpush2.msra.mxu0 0.0
    %334 = vmatprep.mubr.f32.mxu0 0.0
    %335 = vmatmul.mubr.f32.gmra.mxu0 %v264
    %v336 = vpop.f32.mrf.mxu0
    %v337 = vadd.f32 %v261, %v336
    %v338 = vpop.f32.mrf.mxu0
    %339 = vdwg.mxu0
    %v340 = vsel %vm209, %v337, 0.0
    %341 = vadd.xlane.f32.xlu0 %v340
    %v342 = vpop.xlane.xlu0 %341
    %v343 = vmul.f32 %v342, %v217
    %v344 = vsub.f32 %v337, %v343
    %v345 = vmul.f32 %v344, %v344
    %v346 = vsel %vm209, %v345, 0.0
    %347 = vadd.xlane.f32.xlu0 %v346
    %v348 = vpop.xlane.xlu0 %347
    %v349 = vmul.f32 %v348, %v217
    %v350 = vadd.f32 %v349, 1e-05
    %v351 = vrsqrt.pop %v350
    %v352 = vmul.f32 %v344, %v351
    %v353 = vlaneseq
    %v354 = vshrl.u32 %v353, 7
    %v355 = vsub.s32 4, %v354
    %v356 = vrot.slane %v113, %v355
    %v357 = vmul.f32 %v352, %v356
    %v358 = vlaneseq
    %v359 = vshrl.u32 %v358, 7
    %v360 = vsub.s32 5, %v359
    %v361 = vrot.slane %v113, %v360
    %v362 = vadd.f32 %v357, %v361
    %v363 = vld [vmem:[#allocation11] sm:$0xff]
    %v364 = vadd.f32 %v362, %v363
    %365 = vst.msk [vmem:[#allocation14] sm:$0xff] %vm209, %v364
    %v366 = vld [vmem:[%s2] sm:$0xff]
    %v367 = vld [vmem:[%s5] sm:$0x1]
    %369 = vset.pattern.permute.xlu0 0
    %370 = vperm.xlu0 %369, %v366
    %v371 = vpop.permute.xlu0 %370
    %v374 = vlaneseq
    %v375 = vshrl.u32 %v374, 7
    %v376 = vsub.s32 0, %v375
    %v377 = vrot.slane %v367, %v376
    %v379 = vmul.f32 %v371, %v377
    %v380 = vlaneseq
    %v381 = vshrl.u32 %v380, 7
    %v382 = vsub.s32 6, %v381
    %v383 = vrot.slane %v113, %v382
    %v384 = vadd.f32 %v379, %v383
    %v385 = vsel %vm209, %v384, 0.0
    %386 = vadd.xlane.f32.xlu0 %v385
    %v387 = vpop.xlane.xlu0 %386
    %v388 = vmul.f32 %v387, %v217
    %v389 = vsub.f32 %v384, %v388
    %v390 = vmul.f32 %v389, %v389
    %v391 = vsel %vm209, %v390, 0.0
    %392 = vadd.xlane.f32.xlu0 %v391
    %v393 = vpop.xlane.xlu0 %392
    %v394 = vmul.f32 %v393, %v217
    %v395 = vadd.f32 %v394, 1e-05
    %v396 = vrsqrt.pop %v395
    %v397 = vmul.f32 %v389, %v396
    %v398 = vlaneseq
    %v399 = vshrl.u32 %v398, 7
    %v400 = vsub.s32 7, %v399
    %v401 = vrot.slane %v113, %v400
    %v402 = vmul.f32 %v397, %v401
    %v403 = vlaneseq
    %v404 = vshrl.u32 %v403, 7
    %v405 = vsub.s32 0, %v404
    %v406 = vrot.slane %v114, %v405
    %v407 = vadd.f32 %v402, %v406
    %v408 = vld [vmem:[#allocation11] sm:$0xff]
    %v409 = vadd.f32 %v407, %v408
    %410 = vst.msk [vmem:[#allocation16] sm:$0xff] %vm209, %v409
    // Predicated region
    $region62: #{tpu_custom_call.1} parent=1 // pred_check
      _
    $region63: #{tpu_custom_call.1} parent=1 // pred_check_branch
      %412 = sbr.rel (0) target = $region65
    $region64: #{tpu_custom_call.1} parent=1 // pred_region
      %s414 = ssub.s32 256, 256
      %415 = vsyncadd [#allocation4], %s414
      %s416 = sshll.u32 [#allocation13], 4
      %s417 = int_to_ptr.vmem [resolvable:$true] %s416
      %422 = dma.vmem_to_hbm [thread:$0]  %s417, 256, %s9, [#allocation4], 128, 128, 8
    $region65: #{tpu_custom_call.1} parent=1 // pred_fallthru
      _
    // Predicated region
    $region66: #{tpu_custom_call.1} parent=1 // pred_check
      _
    $region67: #{tpu_custom_call.1} parent=1 // pred_check_branch
      %424 = sbr.rel (0) target = $region69
    $region68: #{tpu_custom_call.1} parent=1 // pred_region
      %s426 = ssub.s32 128, 128
      %427 = vsyncadd [#allocation15], %s426
      %s429 = sshll.u32 [#allocation14], 4
      %s430 = int_to_ptr.vmem [resolvable:$true] %s429
      %432 = dma.vmem_to_hbm [thread:$0]  %s430, 128, %s10, [#allocation15]
    $region69: #{tpu_custom_call.1} parent=1 // pred_fallthru
      _
    // Predicated region
    $region70: #{tpu_custom_call.1} parent=1 // pred_check
      _
    $region71: #{tpu_custom_call.1} parent=1 // pred_check_branch
      %434 = sbr.rel (0) target = $region73
    $region72: #{tpu_custom_call.1} parent=1 // pred_region
      %s436 = ssub.s32 128, 128
      %437 = vsyncadd [#allocation15], %s436
      %s439 = sshll.u32 [#allocation16], 4
      %s440 = int_to_ptr.vmem [resolvable:$true] %s439
      %442 = dma.vmem_to_hbm [thread:$0]  %s440, 128, %s11, [#allocation15]
    $region73: #{tpu_custom_call.1} parent=1 // pred_fallthru
      _
    // Predicated region
    $region74: #{tpu_custom_call.1} parent=1 // pred_check
      _
    $region75: #{tpu_custom_call.1} parent=1 // pred_check_branch
      %444 = sbr.rel (0) target = $region77
    $region76: #{tpu_custom_call.1} parent=1 // pred_region
      %445 = dma.done [#allocation4], 256
    $region77: #{tpu_custom_call.1} parent=1 // pred_fallthru
      _
    // Predicated region
    $region78: #{tpu_custom_call.1} parent=1 // pred_check
      _
    $region79: #{tpu_custom_call.1} parent=1 // pred_check_branch
      %447 = sbr.rel (0) target = $region81
    $region80: #{tpu_custom_call.1} parent=1 // pred_region
      %448 = dma.done [#allocation15], 128
    $region81: #{tpu_custom_call.1} parent=1 // pred_fallthru
      _
    // Predicated region
    $region82: #{tpu_custom_call.1} parent=1 // pred_check
      _
    $region83: #{tpu_custom_call.1} parent=1 // pred_check_branch
      %450 = sbr.rel (0) target = $region85
    $region84: #{tpu_custom_call.1} parent=1 // pred_region
      %451 = dma.done [#allocation15], 128
    $region85: #{tpu_custom_call.1} parent=1 // pred_fallthru
      _
    %452 = vsyncpa [#allocation3], 1
    %453 = vsyncpa [#allocation6], 1
    %454 = vsyncpa [#allocation9], 1
    %455 = vsyncpa [#allocation12], 1
    %456 = vsyncpa [#allocation4], 1
    %457 = vsyncpa [#allocation15], 1

</llo_original>
